<compile_context>
chip_gen: v7x
topology: tpu7x:2x2x1
jax: 0.10.0
libtpu: 0.0.40
codegen_flags: <defaults>
</compile_context>

<pallas_src>
import functools

import jax
import jax.numpy as jnp
from jax import lax
from jax.experimental import pallas as pl
from jax.experimental.pallas import tpu as pltpu


def _round_up(x, m):
    return ((x + m - 1) // m) * m


def _default_pix_tile():
    # v5e has a single vector-store slot -> keep vreg pressure lower there.
    try:
        kind = jax.devices()[0].device_kind.lower()
    except Exception:  # pragma: no cover - defensive
        kind = ""
    if ("v5 lite" in kind) or ("v5e" in kind) or ("v5litepod" in kind):
        return 512
    return 1024


# ----------------------------------------------------------------------------
# Kernel 1: per-vertex camera transform + projection + affine + NDC normalise.
# Vertices are coordinate-major (B, 3, Vpad): coords on sublanes, vertices
# lane-dense; tiled along the vertex axis so large meshes stay within VMEM
# and DMA/compute overlap is preserved.
# ----------------------------------------------------------------------------
def _project_kernel(params_ref, vertex_ref, out_ref, *, img_h, img_w):
    b = pl.program_id(0)

    cpx = params_ref[b, 0]
    cpy = params_ref[b, 1]
    cpz = params_ref[b, 2]
    r00 = params_ref[b, 3]
    r01 = params_ref[b, 4]
    r02 = params_ref[b, 5]
    r10 = params_ref[b, 6]
    r11 = params_ref[b, 7]
    r12 = params_ref[b, 8]
    r20 = params_ref[b, 9]
    r21 = params_ref[b, 10]
    r22 = params_ref[b, 11]
    fx = params_ref[b, 12]
    fy = params_ref[b, 13]
    px = params_ref[b, 14]
    py = params_ref[b, 15]
    a00 = params_ref[b, 16]
    a01 = params_ref[b, 17]
    a02 = params_ref[b, 18]
    a10 = params_ref[b, 19]
    a11 = params_ref[b, 20]
    a12 = params_ref[b, 21]

    vert = vertex_ref[0]                         # (3, VT) -- single read
    vx = vert[0:1, :] - cpx                      # (1, VT)
    vy = vert[1:2, :] - cpy
    vz = vert[2:3, :] - cpz

    # camrot @ (vertex - campos)
    X = r00 * vx + r01 * vy + r02 * vz
    Y = r10 * vx + r11 * vy + r12 * vz
    Z = r20 * vx + r21 * vy + r22 * vz
    Z = Z + (Z == 0.0).astype(jnp.float32) * 1e-4

    # pinhole projection -- single reciprocal shared by u and v
    inv_z = 1.0 / Z
    u = X * inv_z * fx + px
    v = Y * inv_z * fy + py

    # 2x3 image affine transform applied to [u, v, 1]
    u2 = a00 * u + a01 * v + a02
    v2 = a10 * u + a11 * v + a12

    w_f = float(img_w)
    h_f = float(img_h)
    xn = u2 / w_f * 2.0 - 1.0
    yn = (h_f - 1.0 - v2) / h_f * 2.0 - 1.0

    # single merged (3, VT) store instead of three 1-sublane partial stores
    out_ref[0] = jnp.concatenate([xn, yn, Z], axis=0)


def _project(params, vertex_cv, img_h, img_w, *, max_vert_tile=1024):
    # params: (B, 22) f32 SMEM; vertex_cv: (B, 3, Vpad) f32
    bsz, _, vpad = vertex_cv.shape
    vt = min(max_vert_tile, vpad)
    n_vt = vpad // vt
    kernel = functools.partial(_project_kernel, img_h=img_h, img_w=img_w)
    return pl.pallas_call(
        kernel,
        out_shape=jax.ShapeDtypeStruct((bsz, 3, vpad), jnp.float32),
        grid=(bsz, n_vt),
        in_specs=[
            pl.BlockSpec(memory_space=pltpu.MemorySpace.SMEM),
            pl.BlockSpec((1, 3, vt), lambda b, t: (b, 0, t)),
        ],
        out_specs=pl.BlockSpec((1, 3, vt), lambda b, t: (b, 0, t)),
        compiler_params=pltpu.CompilerParams(
            dimension_semantics=("parallel", "parallel")
        ),
    )(params, vertex_cv)


# ----------------------------------------------------------------------------
# Kernel 2: tiled depth rasterizer, accumulating MAX of inverse depth.
#
# Per-face coefficient table (precomputed in the wrapper, 16 f32 per face):
#   [0..2]  Ea0, Eb0, Ec0   : sign-normalised edge/barycentric numerator 0
#   [3..5]  Ea1, Eb1, Ec1   : sign-normalised edge/barycentric numerator 1
#   [6..8]  Wa,  Wb,  Wc    : 1/z_pixel = Wa*x + Wb*y + Wc   (affine in NDC!)
#   [9]     Dabs            : |denom| so that e2 = Dabs - e0 - e1
#   [10..15] padding
# ----------------------------------------------------------------------------
def _raster_kernel(xy_ref, coef_ref, out_ref, acc_ref, *,
                   inv_near, inv_far, n_groups, unroll):
    f = pl.program_id(2)
    nf = pl.num_programs(2)

    xp = xy_ref[0:1, :]          # (1, PIX_TILE)  -- loop invariant
    yp = xy_ref[1:2, :]          # (1, PIX_TILE)

    @pl.when(f == 0)
    def _():
        # far clip comes for free: faces with w <= 1/far can never win the max
        acc_ref[...] = jnp.full_like(acc_ref, inv_far)

    def body(g, acc):
        g8 = pl.multiple_of(g * 8, 8)
        grp = coef_ref[0, pl.ds(g8, 8), :]          # (8, 16) -- 8 faces
        ea0 = grp[:, 0:1]
        eb0 = grp[:, 1:2]
        ec0 = grp[:, 2:3]
        ea1 = grp[:, 3:4]
        eb1 = grp[:, 4:5]
        ec1 = grp[:, 5:6]
        wa = grp[:, 6:7]
        wb = grp[:, 7:8]
        wc = grp[:, 8:9]
        dab = grp[:, 9:10]

        # two sign-normalised edge functions; third derived from |denom|
        e0 = ea0 * xp + eb0 * yp + ec0              # (8, PIX_TILE)
        e1 = ea1 * xp + eb1 * yp + ec1
        m = jnp.minimum(e0, e1)
        e2 = dab - e0 - e1
        m = jnp.minimum(m, e2)

        # inverse depth is an affine function of the pixel coordinates
        w = wa * xp + wb * yp + wc

        # inside (winding-agnostic) & near clip; far clip via acc init
        valid = (m >= 0.0) & (w < inv_near)
        return jnp.where(valid, jnp.maximum(acc, w), acc)

    acc = lax.fori_loop(0, n_groups, body, acc_ref[...], unroll=unroll)
    acc_ref[...] = acc

    @pl.when(f == nf - 1)
    def _():
        red = jnp.max(acc, axis=0, keepdims=True)       # (1, PIX_TILE) XLU reduce
        depth = pl.reciprocal(red, approx=True)         # one EUP op per pixel tile
        # background (acc stayed at 1/far) -> 0, matching `depth == far -> 0`
        out_ref[0] = jnp.where(red > inv_far, depth, 0.0)


def _rasterize(coef, image_size, near, far, *, max_pix_tile=None, max_face_chunk=512):
    # coef: (B, F, 16) f32 -> (B, 1, hw_pad) f32 (flattened square image)
    bsz, nface, _ = coef.shape
    hw = image_size * image_size

    if max_pix_tile is None:
        max_pix_tile = _default_pix_tile()
    pix_tile = min(max_pix_tile, _round_up(hw, 128))
    hw_pad = _round_up(hw, pix_tile)
    n_pix = hw_pad // pix_tile

    fchunk = min(max_face_chunk, _round_up(nface, 8))
    fpad = _round_up(nface, fchunk)
    n_fchunk = fpad // fchunk
    n_groups = fchunk // 8
    # edge-replicate padding faces: duplicates cannot change the max
    coef = jnp.pad(coef, ((0, 0), (0, fpad - nface), (0, 0)), mode="edge")

    # Precompute pixel NDC coordinates (neural_renderer pixel-centre convention
    # + vertical flip) once in plain JAX -- loop-invariant over face chunks.
    s_f = float(image_size)
    pix = jnp.arange(hw_pad, dtype=jnp.int32)
    xi = (pix % image_size).astype(jnp.float32)
    yi = (pix // image_size).astype(jnp.float32)
    xp = (2.0 * xi + 1.0 - s_f) / s_f
    yp = (s_f - 1.0 - 2.0 * yi) / s_f
    xy = jnp.stack([xp, yp], axis=0)                 # (2, hw_pad)

    inv_near = 1.0 / float(near)
    inv_far = 1.0 / float(far)
    unroll = n_groups if n_groups <= 8 else 2        # partial unroll for LLO visibility

    kernel = functools.partial(
        _raster_kernel, inv_near=inv_near, inv_far=inv_far,
        n_groups=n_groups, unroll=unroll)
    # TODO(synk): coefficient-major (B, 16, Fpad) layout + resident-in-VMEM face
    # table would further cut face DMA/VMEM waste; kept face-major here since
    # the kernel is VALU-bound and this layout is known to lower cleanly.
    out = pl.pallas_call(
        kernel,
        out_shape=jax.ShapeDtypeStruct((bsz, 1, hw_pad), jnp.float32),
        grid=(bsz, n_pix, n_fchunk),
        in_specs=[
            pl.BlockSpec((2, pix_tile), lambda b, p, f: (0, p)),
            pl.BlockSpec((1, fchunk, 16), lambda b, p, f: (b, f, 0)),
        ],
        out_specs=pl.BlockSpec((1, 1, pix_tile), lambda b, p, f: (b, 0, p)),
        scratch_shapes=[pltpu.VMEM((8, pix_tile), jnp.float32)],
        compiler_params=pltpu.CompilerParams(
            dimension_semantics=("parallel", "parallel", "arbitrary")
        ),
    )(xy, coef)
    return out[:, :, :hw]


# ----------------------------------------------------------------------------
# Wrapper equivalent to RenderLayer.forward
# ----------------------------------------------------------------------------
def render_layer_forward(vertex, cam_param, img_affine_trans_mat, mesh, cfg):
    vertex = vertex.astype(jnp.float32)
    bsz, nvert, _ = vertex.shape
    img_h, img_w = cfg["rendered_img_shape"]
    near, far = float(cfg["depth_min"]), float(cfg["depth_max"])
    vi = mesh["vi"].astype(jnp.int32)          # (F, 3)

    # --- pack per-batch camera parameters (B, 22) for SMEM ---
    params = jnp.concatenate(
        [
            cam_param["campos"].reshape(bsz, 3),
            cam_param["camrot"].reshape(bsz, 9),
            cam_param["focal"].reshape(bsz, 2),
            cam_param["princpt"].reshape(bsz, 2),
            img_affine_trans_mat.reshape(bsz, 6),
        ],
        axis=1,
    ).astype(jnp.float32)

    # --- coordinate-major vertex layout, lane padding (tile-aligned) ---
    vpad = _round_up(nvert, 128)
    vt = min(1024, vpad)
    vpad = _round_up(vpad, vt)
    vertex_p = jnp.pad(vertex, ((0, 0), (0, vpad - nvert), (0, 0)), mode="edge")
    vertex_cv = jnp.transpose(vertex_p, (0, 2, 1))          # (B, 3, Vpad)

    # --- kernel 1: project to vertex_2d_norm, layout (B, 3, Vpad) ---
    v2n = _project(params, vertex_cv, img_h, img_w, max_vert_tile=vt)

    # --- gather triangle corners + hoisted per-face coefficient setup -------
    # TODO(synk): the corner gather could be fused into the rasterizer (scalar
    # prefetch / one-hot MXU matmul); kept as XLA wrapper glue for robustness.
    v2n_vm = jnp.transpose(v2n, (0, 2, 1))      # (B, Vpad, 3) rows = [x, y, z]
    c0 = jnp.take(v2n_vm, vi[:, 0], axis=1)     # (B, F, 3)
    c1 = jnp.take(v2n_vm, vi[:, 1], axis=1)
    c2 = jnp.take(v2n_vm, vi[:, 2], axis=1)
    x0, y0, z0 = c0[..., 0], c0[..., 1], c0[..., 2]
    x1, y1, z1 = c1[..., 0], c1[..., 1], c1[..., 2]
    x2, y2, z2 = c2[..., 0], c2[..., 1], c2[..., 2]

    # edge / barycentric-numerator coefficients  n_k = Ea_k*x + Eb_k*y + Ec_k
    ea0 = y1 - y2
    eb0 = x2 - x1
    ec0 = x1 * y2 - x2 * y1
    ea1 = y2 - y0
    eb1 = x0 - x2
    ec1 = x2 * y0 - x0 * y2
    ea2 = y0 - y1
    eb2 = x1 - x0
    ec2 = x0 * y1 - x1 * y0
    den = ec0 + ec1 + ec2                        # 2x signed area
    deg = den == 0.0                             # degenerate faces -> culled
    sgn = jnp.where(den > 0.0, 1.0, -1.0)
    sgn = jnp.where(deg, 0.0, sgn)
    inv_den = jnp.where(deg, 0.0, 1.0 / jnp.where(deg, 1.0, den))

    # inverse-depth plane:  1/z_pixel = Wa*x + Wb*y + Wc  (perspective correct)
    iz0 = 1.0 / z0                               # z was nudged nonzero in kernel 1
    iz1 = 1.0 / z1
    iz2 = 1.0 / z2
    wa = (ea0 * iz0 + ea1 * iz1 + ea2 * iz2) * inv_den
    wb = (eb0 * iz0 + eb1 * iz1 + eb2 * iz2) * inv_den
    wc = (ec0 * iz0 + ec1 * iz1 + ec2 * iz2) * inv_den

    zeros = jnp.zeros_like(den)
    coef = jnp.stack(
        [
            sgn * ea0, sgn * eb0, jnp.where(deg, -1.0, sgn * ec0),
            sgn * ea1, sgn * eb1, sgn * ec1,
            wa, wb, wc,
            sgn * den,                            # |denom| (0 for degenerate)
            zeros, zeros, zeros, zeros, zeros, zeros,
        ],
        axis=-1,
    ).astype(jnp.float32)                         # (B, F, 16)

    # --- kernel 2: depth rasterization (square image of size img_h, exactly
    #     like nr.rasterize_depth(..., cfg.rendered_img_shape[0], ...)) ---
    # TODO(synk): exact bit-level parity with neural_renderer's CUDA rasterizer
    # (tie-breaking on shared edges, bounding-box traversal order) is not
    # reproduced; the math (barycentric sign test, 1/z interpolation, near/far
    # clip, depth==far -> 0) is.
    depth_flat = _rasterize(coef, img_h, near, far)          # (B, 1, H*H)
    return depth_flat.reshape(bsz, 1, img_h, img_h)          # NCHW like PyTorch


if __name__ == "__main__":
    key = jax.random.PRNGKey(0)
    B, V, F = 2, 64, 40
    H = W = 16
    cfg = {"rendered_img_shape": (H, W), "depth_min": 0.5, "depth_max": 10.0}

    k1, k2, k3 = jax.random.split(key, 3)
    xy = jax.random.uniform(k1, (B, V, 2), minval=-1.0, maxval=1.0)
    zz = jax.random.uniform(k2, (B, V, 1), minval=4.0, maxval=6.0)
    vertex = jnp.concatenate([xy, zz], axis=-1).astype(jnp.float32)

    vi = jax.random.randint(k3, (F, 3), 0, V, dtype=jnp.int32)
    mesh = {"vi": vi}

    focal = jnp.tile(jnp.array([[20.0, 20.0]], jnp.float32), (B, 1))
    princpt = jnp.tile(jnp.array([[W / 2.0, H / 2.0]], jnp.float32), (B, 1))
    campos = jnp.zeros((B, 3), jnp.float32)
    camrot = jnp.tile(jnp.eye(3, dtype=jnp.float32)[None], (B, 1, 1))
    cam_param = {
        "focal": focal,
        "princpt": princpt,
        "campos": campos,
        "camrot": camrot,
    }
    affine = jnp.tile(
        jnp.array([[[1.0, 0.0, 0.0], [0.0, 1.0, 0.0]]], jnp.float32), (B, 1, 1)
    )

    out = render_layer_forward(vertex, cam_param, affine, mesh, cfg)
    out = jax.block_until_ready(out)
    assert out.shape == (B, 1, H, W), out.shape
    assert bool(jnp.all(jnp.isfinite(out)))
    assert bool(jnp.all(out >= 0.0)) and bool(jnp.all(out < cfg["depth_max"]))
    print("KERNEL_OK")
</pallas_src>

<mosaic_0001>
module attributes {stable_mosaic.version = 11 : i64} {
  func.func @_project_kernel(%arg0: i32, %arg1: i32, %arg2: memref<2x22xf32, #tpu.memory_space<smem>>, %arg3: memref<1x3x128xf32, #tpu.memory_space<vmem>>, %arg4: memref<1x3x128xf32, #tpu.memory_space<vmem>>) attributes {dimension_semantics = [#tpu.dimension_semantics<parallel>, #tpu.dimension_semantics<parallel>], iteration_bounds = array<i64: 2, 1>, scalar_prefetch = 0 : i64, scratch_operands = 0 : i64, tpu.core_type = #tpu.core_type<tc>, window_params = [{transform_indices = @transform_0, window_bounds = array<i64: 2, 22>}, {transform_indices = @transform_1, window_bounds = array<i64: 1, 3, 128>}, {transform_indices = @transform_2, window_bounds = array<i64: 1, 3, 128>}]} {
    %0 = arith.index_cast %arg0 : i32 to index
    %c0 = arith.constant 0 : index
    %1 = memref.load %arg2[%0, %c0] : memref<2x22xf32, #tpu.memory_space<smem>>
    %2 = arith.index_cast %arg0 : i32 to index
    %c1 = arith.constant 1 : index
    %3 = memref.load %arg2[%2, %c1] : memref<2x22xf32, #tpu.memory_space<smem>>
    %4 = arith.index_cast %arg0 : i32 to index
    %c2 = arith.constant 2 : index
    %5 = memref.load %arg2[%4, %c2] : memref<2x22xf32, #tpu.memory_space<smem>>
    %6 = arith.index_cast %arg0 : i32 to index
    %c3 = arith.constant 3 : index
    %7 = memref.load %arg2[%6, %c3] : memref<2x22xf32, #tpu.memory_space<smem>>
    %8 = arith.index_cast %arg0 : i32 to index
    %c4 = arith.constant 4 : index
    %9 = memref.load %arg2[%8, %c4] : memref<2x22xf32, #tpu.memory_space<smem>>
    %10 = arith.index_cast %arg0 : i32 to index
    %c5 = arith.constant 5 : index
    %11 = memref.load %arg2[%10, %c5] : memref<2x22xf32, #tpu.memory_space<smem>>
    %12 = arith.index_cast %arg0 : i32 to index
    %c6 = arith.constant 6 : index
    %13 = memref.load %arg2[%12, %c6] : memref<2x22xf32, #tpu.memory_space<smem>>
    %14 = arith.index_cast %arg0 : i32 to index
    %c7 = arith.constant 7 : index
    %15 = memref.load %arg2[%14, %c7] : memref<2x22xf32, #tpu.memory_space<smem>>
    %16 = arith.index_cast %arg0 : i32 to index
    %c8 = arith.constant 8 : index
    %17 = memref.load %arg2[%16, %c8] : memref<2x22xf32, #tpu.memory_space<smem>>
    %18 = arith.index_cast %arg0 : i32 to index
    %c9 = arith.constant 9 : index
    %19 = memref.load %arg2[%18, %c9] : memref<2x22xf32, #tpu.memory_space<smem>>
    %20 = arith.index_cast %arg0 : i32 to index
    %c10 = arith.constant 10 : index
    %21 = memref.load %arg2[%20, %c10] : memref<2x22xf32, #tpu.memory_space<smem>>
    %22 = arith.index_cast %arg0 : i32 to index
    %c11 = arith.constant 11 : index
    %23 = memref.load %arg2[%22, %c11] : memref<2x22xf32, #tpu.memory_space<smem>>
    %24 = arith.index_cast %arg0 : i32 to index
    %c12 = arith.constant 12 : index
    %25 = memref.load %arg2[%24, %c12] : memref<2x22xf32, #tpu.memory_space<smem>>
    %26 = arith.index_cast %arg0 : i32 to index
    %c13 = arith.constant 13 : index
    %27 = memref.load %arg2[%26, %c13] : memref<2x22xf32, #tpu.memory_space<smem>>
    %28 = arith.index_cast %arg0 : i32 to index
    %c14 = arith.constant 14 : index
    %29 = memref.load %arg2[%28, %c14] : memref<2x22xf32, #tpu.memory_space<smem>>
    %30 = arith.index_cast %arg0 : i32 to index
    %c15 = arith.constant 15 : index
    %31 = memref.load %arg2[%30, %c15] : memref<2x22xf32, #tpu.memory_space<smem>>
    %32 = arith.index_cast %arg0 : i32 to index
    %c16 = arith.constant 16 : index
    %33 = memref.load %arg2[%32, %c16] : memref<2x22xf32, #tpu.memory_space<smem>>
    %34 = arith.index_cast %arg0 : i32 to index
    %c17 = arith.constant 17 : index
    %35 = memref.load %arg2[%34, %c17] : memref<2x22xf32, #tpu.memory_space<smem>>
    %36 = arith.index_cast %arg0 : i32 to index
    %c18 = arith.constant 18 : index
    %37 = memref.load %arg2[%36, %c18] : memref<2x22xf32, #tpu.memory_space<smem>>
    %38 = arith.index_cast %arg0 : i32 to index
    %c19 = arith.constant 19 : index
    %39 = memref.load %arg2[%38, %c19] : memref<2x22xf32, #tpu.memory_space<smem>>
    %40 = arith.index_cast %arg0 : i32 to index
    %c20 = arith.constant 20 : index
    %41 = memref.load %arg2[%40, %c20] : memref<2x22xf32, #tpu.memory_space<smem>>
    %42 = arith.index_cast %arg0 : i32 to index
    %c21 = arith.constant 21 : index
    %43 = memref.load %arg2[%42, %c21] : memref<2x22xf32, #tpu.memory_space<smem>>
    %c0_0 = arith.constant 0 : index
    %c0_1 = arith.constant 0 : index
    %c0_2 = arith.constant 0 : index
    %44 = vector.load %arg3[%c0_0, %c0_1, %c0_2] : memref<1x3x128xf32, #tpu.memory_space<vmem>>, vector<1x3x128xf32>
    %45 = vector.shape_cast %44 : vector<1x3x128xf32> to vector<3x128xf32>
    %46 = vector.extract_strided_slice %45 {offsets = [0, 0], sizes = [1, 128], strides = [1, 1]} : vector<3x128xf32> to vector<1x128xf32>
    %47 = vector.broadcast %1 : f32 to vector<1x128xf32>
    %48 = arith.subf %46, %47 : vector<1x128xf32>
    %49 = vector.extract_strided_slice %45 {offsets = [1, 0], sizes = [1, 128], strides = [1, 1]} : vector<3x128xf32> to vector<1x128xf32>
    %50 = vector.broadcast %3 : f32 to vector<1x128xf32>
    %51 = arith.subf %49, %50 : vector<1x128xf32>
    %52 = vector.extract_strided_slice %45 {offsets = [2, 0], sizes = [1, 128], strides = [1, 1]} : vector<3x128xf32> to vector<1x128xf32>
    %53 = vector.broadcast %5 : f32 to vector<1x128xf32>
    %54 = arith.subf %52, %53 : vector<1x128xf32>
    %55 = vector.broadcast %7 : f32 to vector<1x128xf32>
    %56 = arith.mulf %55, %48 : vector<1x128xf32>
    %57 = vector.broadcast %9 : f32 to vector<1x128xf32>
    %58 = arith.mulf %57, %51 : vector<1x128xf32>
    %59 = arith.addf %56, %58 : vector<1x128xf32>
    %60 = vector.broadcast %11 : f32 to vector<1x128xf32>
    %61 = arith.mulf %60, %54 : vector<1x128xf32>
    %62 = arith.addf %59, %61 : vector<1x128xf32>
    %63 = vector.broadcast %13 : f32 to vector<1x128xf32>
    %64 = arith.mulf %63, %48 : vector<1x128xf32>
    %65 = vector.broadcast %15 : f32 to vector<1x128xf32>
    %66 = arith.mulf %65, %51 : vector<1x128xf32>
    %67 = arith.addf %64, %66 : vector<1x128xf32>
    %68 = vector.broadcast %17 : f32 to vector<1x128xf32>
    %69 = arith.mulf %68, %54 : vector<1x128xf32>
    %70 = arith.addf %67, %69 : vector<1x128xf32>
    %71 = vector.broadcast %19 : f32 to vector<1x128xf32>
    %72 = arith.mulf %71, %48 : vector<1x128xf32>
    %73 = vector.broadcast %21 : f32 to vector<1x128xf32>
    %74 = arith.mulf %73, %51 : vector<1x128xf32>
    %75 = arith.addf %72, %74 : vector<1x128xf32>
    %76 = vector.broadcast %23 : f32 to vector<1x128xf32>
    %77 = arith.mulf %76, %54 : vector<1x128xf32>
    %78 = arith.addf %75, %77 : vector<1x128xf32>
    %cst = arith.constant 0.000000e+00 : f32
    %79 = vector.broadcast %cst : f32 to vector<1x128xf32>
    %80 = arith.cmpf oeq, %78, %79 : vector<1x128xf32>
    %81 = arith.extui %80 : vector<1x128xi1> to vector<1x128xi32>
    %82 = arith.sitofp %81 : vector<1x128xi32> to vector<1x128xf32>
    %cst_3 = arith.constant 9.99999974E-5 : f32
    %83 = vector.broadcast %cst_3 : f32 to vector<1x128xf32>
    %84 = arith.mulf %82, %83 : vector<1x128xf32>
    %85 = arith.addf %78, %84 : vector<1x128xf32>
    %cst_4 = arith.constant 1.000000e+00 : f32
    %86 = vector.broadcast %cst_4 : f32 to vector<1x128xf32>
    %87 = arith.divf %86, %85 : vector<1x128xf32>
    %88 = arith.mulf %62, %87 : vector<1x128xf32>
    %89 = vector.broadcast %25 : f32 to vector<1x128xf32>
    %90 = arith.mulf %88, %89 : vector<1x128xf32>
    %91 = vector.broadcast %29 : f32 to vector<1x128xf32>
    %92 = arith.addf %90, %91 : vector<1x128xf32>
    %93 = arith.mulf %70, %87 : vector<1x128xf32>
    %94 = vector.broadcast %27 : f32 to vector<1x128xf32>
    %95 = arith.mulf %93, %94 : vector<1x128xf32>
    %96 = vector.broadcast %31 : f32 to vector<1x128xf32>
    %97 = arith.addf %95, %96 : vector<1x128xf32>
    %98 = vector.broadcast %33 : f32 to vector<1x128xf32>
    %99 = arith.mulf %98, %92 : vector<1x128xf32>
    %100 = vector.broadcast %35 : f32 to vector<1x128xf32>
    %101 = arith.mulf %100, %97 : vector<1x128xf32>
    %102 = arith.addf %99, %101 : vector<1x128xf32>
    %103 = vector.broadcast %37 : f32 to vector<1x128xf32>
    %104 = arith.addf %102, %103 : vector<1x128xf32>
    %105 = vector.broadcast %39 : f32 to vector<1x128xf32>
    %106 = arith.mulf %105, %92 : vector<1x128xf32>
    %107 = vector.broadcast %41 : f32 to vector<1x128xf32>
    %108 = arith.mulf %107, %97 : vector<1x128xf32>
    %109 = arith.addf %106, %108 : vector<1x128xf32>
    %110 = vector.broadcast %43 : f32 to vector<1x128xf32>
    %111 = arith.addf %109, %110 : vector<1x128xf32>
    %cst_5 = arith.constant 1.600000e+01 : f32
    %112 = vector.broadcast %cst_5 : f32 to vector<1x128xf32>
    %113 = arith.divf %104, %112 : vector<1x128xf32>
    %cst_6 = arith.constant 2.000000e+00 : f32
    %114 = vector.broadcast %cst_6 : f32 to vector<1x128xf32>
    %115 = arith.mulf %113, %114 : vector<1x128xf32>
    %cst_7 = arith.constant 1.000000e+00 : f32
    %116 = vector.broadcast %cst_7 : f32 to vector<1x128xf32>
    %117 = arith.subf %115, %116 : vector<1x128xf32>
    %cst_8 = arith.constant 1.500000e+01 : f32
    %118 = vector.broadcast %cst_8 : f32 to vector<1x128xf32>
    %119 = arith.subf %118, %111 : vector<1x128xf32>
    %cst_9 = arith.constant 1.600000e+01 : f32
    %120 = vector.broadcast %cst_9 : f32 to vector<1x128xf32>
    %121 = arith.divf %119, %120 : vector<1x128xf32>
    %cst_10 = arith.constant 2.000000e+00 : f32
    %122 = vector.broadcast %cst_10 : f32 to vector<1x128xf32>
    %123 = arith.mulf %121, %122 : vector<1x128xf32>
    %cst_11 = arith.constant 1.000000e+00 : f32
    %124 = vector.broadcast %cst_11 : f32 to vector<1x128xf32>
    %125 = arith.subf %123, %124 : vector<1x128xf32>
    %126 = tpu.concatenate %117, %125, %85 in 0 : vector<1x128xf32>, vector<1x128xf32>, vector<1x128xf32> -> vector<3x128xf32>
    %c0_12 = arith.constant 0 : index
    %c0_13 = arith.constant 0 : index
    %c0_14 = arith.constant 0 : index
    %127 = vector.load %arg4[%c0_12, %c0_13, %c0_14] : memref<1x3x128xf32, #tpu.memory_space<vmem>>, vector<1x3x128xf32>
    %128 = vector.shape_cast %127 : vector<1x3x128xf32> to vector<3x128xf32>
    %129 = vector.shape_cast %126 : vector<3x128xf32> to vector<1x3x128xf32>
    tpu.vector_store %arg4[%c0_12, %c0_13, %c0_14], %129 {strides = array<i32>} : memref<1x3x128xf32, #tpu.memory_space<vmem>>, vector<1x3x128xf32>,
    return
  }
  func.func @transform_0(%arg0: i32, %arg1: i32) -> (i32, i32) {
    %c0_i32 = arith.constant 0 : i32
    %c0_i32_0 = arith.constant 0 : i32
    %c0_i32_1 = arith.constant 0 : i32
    return %c0_i32, %c0_i32_0 : i32, i32
  }
  func.func @transform_1(%arg0: i32, %arg1: i32) -> (i32, i32, i32) {
    %c0_i32 = arith.constant 0 : i32
    %c0_i32_0 = arith.constant 0 : i32
    return %arg0, %c0_i32, %arg1 : i32, i32, i32
  }
  func.func @transform_2(%arg0: i32, %arg1: i32) -> (i32, i32, i32) {
    %c0_i32 = arith.constant 0 : i32
    %c0_i32_0 = arith.constant 0 : i32
    return %arg0, %c0_i32, %arg1 : i32, i32, i32
  }
}

</mosaic_0001>

<llo_original>
// kernel: tpu_custom_call.1
$region0: #{tpu_custom_call.1}
  #allocation0 [shape = 'u32[]', space=smem, size = 0x4, offset = 0x4, fixed_abs, tag = 'smem constant byte address 0x4 - core index']
  #allocation1 [shape = 'u32[144,128]{1,0:T(1,128)}', space=vmem, size = 0x12000, scoped, tag = 'internal scratch']
  %s0 = inlined_call_operand.vmem [shape: f32[2,22], index: 0, kind: input, shape index: {}]
  %s1 = inlined_call_operand.vmem [shape: f32[2,3,128], index: 1, kind: input, shape index: {}]
  %s2 = inlined_call_operand.vmem [shape: f32[2,3,128], index: 2, kind: output, shape index: {}]
  %s3 = sld [smem:[#allocation0]]
  $region45: #{tpu_custom_call.1} parent=0
    _
  %s5 = ssub.s32 1, %s3
  %s6 = scalar_select 0, %s5, %s3
  $region1: #{tpu_custom_call.1} parent=0
    #allocation2 [shape = 'u8[1024]{0}', space=smem, size = 0x400, scoped, tag = 'input window, operand 0, single buffered']
    #allocation3 [shape = 's32[2]{0}', space=sflag, size = 0x8, scoped, tag = 'scoped memory for tpu_custom_call.1']
    %7 = vsyncpa [#allocation3], 0
    loop: start=0, step=1, limit=4
    $region2: #{tpu_custom_call.1} parent=1 // loop_pre_header
      _
    $region3: #{tpu_custom_call.1} parent=1 // loop_header
      %s9 = sphi 0, %s13
      %p10 = scmp.ge.s32.totalorder %s9, 4
      %s16 = sphi 0, %s28
      %s17 = sphi 0, %s24
      %s18 = sphi 0, %s16
      %s19 = sphi 0, %s17
      %s20 = sphi 0, %s18
      %s21 = sphi 0, %s19
      %s29 = sphi 0, %s29
      %s31 = sphi 0, %s29
      %s32 = sphi 0, %s31
      %s46 = sphi 0, %s32
      %s54 = sphi 0, %s56
      %s57 = sphi 0, %s54
      %s58 = sphi 0, %s57
      %s74 = sphi 0, %s58
      %s82 = sphi 0, %s84
      %s85 = sphi 0, %s82
      %s86 = sphi 0, %s85
      %s102 = sphi 0, %s86
    $region4: #{tpu_custom_call.1} parent=1 // loop_header_branch
      %12 = sbr.rel (%p10) target = $region8
    $region5: #{tpu_custom_call.1} parent=1 // loop_body
      %s14 = ssub.s32 %s9, 1
      %s15 = ssub.s32 %s9, 2
      %s22 = sadd.s32 1, %s17
      %p23 = scmp.ge.s32.totalorder %s22, 1
      %s24 = scalar_select %p23, 0, %s22
      %s25 = sadd.s32 1, %s16
      %s26 = scalar_select %p23, %s25, %s16
      %p27 = scmp.ge.s32.totalorder %s26, 2
      %s28 = scalar_select %p27, 0, %s26
      %s30 = sadd.s32 %s29, 1
      %p33 = scmp.eq.s32.totalorder %s9, 1
      %p34 = scmp.ne.s32.totalorder %s29, %s31
      %p35 = scmp.eq.s32.totalorder %s9, 0
      %p36 = por %p34, %p35
      %p37 = scmp.ne.s32.totalorder %s29, %s31
      %p38 = scmp.eq.s32.totalorder %s14, 1
      %p39 = por %p37, %p38
      %p40 = scmp.ne.s32.totalorder %s31, %s32
      %p41 = scmp.eq.s32.totalorder %s14, 0
      %p42 = por %p40, %p41
      %p43 = scmp.ne.s32.totalorder %s31, %s32
      %p44 = scmp.eq.s32.totalorder %s15, 1
      %p45 = por %p43, %p44
      %p47 = scmp.ne.s32.totalorder %s32, %s46
      %p48 = scmp.eq.s32.totalorder %s15, 0
      %p49 = por %p47, %p48
      %s50 = ssub.s32 %s16, %s28
      %s51 = ssub.s32 %s17, %s24
      %s52 = sor.u32 %s50, %s51
      %p53 = scmp.eq.s32.totalorder %s52, 0
      %s55 = sadd.s32 %s54, 1
      %s56 = scalar_select %p53, %s54, %s55
      %p59 = pneg %p53
      %p60 = scmp.eq.s32.totalorder %s9, 1
      %p61 = por %p59, %p60
      %p62 = scmp.ne.s32.totalorder %s54, %s57
      %p63 = scmp.eq.s32.totalorder %s9, 0
      %p64 = por %p62, %p63
      %p65 = scmp.ne.s32.totalorder %s54, %s57
      %p66 = scmp.eq.s32.totalorder %s14, 1
      %p67 = por %p65, %p66
      %p68 = scmp.ne.s32.totalorder %s57, %s58
      %p69 = scmp.eq.s32.totalorder %s14, 0
      %p70 = por %p68, %p69
      %p71 = scmp.ne.s32.totalorder %s57, %s58
      %p72 = scmp.eq.s32.totalorder %s15, 1
      %p73 = por %p71, %p72
      %p75 = scmp.ne.s32.totalorder %s58, %s74
      %p76 = scmp.eq.s32.totalorder %s15, 0
      %p77 = por %p75, %p76
      %s78 = ssub.s32 %s16, %s28
      %s79 = ssub.s32 %s17, %s24
      %s80 = sor.u32 %s78, %s79
      %p81 = scmp.eq.s32.totalorder %s80, 0
      %s83 = sadd.s32 %s82, 1
      %s84 = scalar_select %p81, %s82, %s83
      %p87 = pneg %p81
      %p88 = scmp.eq.s32.totalorder %s9, 1
      %p89 = por %p87, %p88
      %p90 = scmp.ne.s32.totalorder %s82, %s85
      %p91 = scmp.eq.s32.totalorder %s9, 0
      %p92 = por %p90, %p91
      %p93 = scmp.ne.s32.totalorder %s82, %s85
      %p94 = scmp.eq.s32.totalorder %s14, 1
      %p95 = por %p93, %p94
      %p96 = scmp.ne.s32.totalorder %s85, %s86
      %p97 = scmp.eq.s32.totalorder %s14, 0
      %p98 = por %p96, %p97
      %p99 = scmp.ne.s32.totalorder %s85, %s86
      %p100 = scmp.eq.s32.totalorder %s15, 1
      %p101 = por %p99, %p100
      %p103 = scmp.ne.s32.totalorder %s86, %s102
      %p104 = scmp.eq.s32.totalorder %s15, 0
      %p105 = por %p103, %p104
      %p106 = scmp.le.s32.totalorder 1, %s9
      %p107 = scmp.lt.s32.totalorder %s9, 3
      %p108 = pnand %p106, %p107
      %p109 = pneg %p108
      // Predicated region
      $region9: #{tpu_custom_call.1} parent=5 // pred_check
        _
      $region10: #{tpu_custom_call.1} parent=5 // pred_check_branch
        %111 = sbr.rel (%p108) target = $region12
      $region11: #{tpu_custom_call.1} parent=5 // pred_region
        %s112 = ssub.s32 %s9, 1
        // Predicated region
        $region13: #{tpu_custom_call.1} parent=11 // pred_check
          %p113 = pneg %p42
        $region14: #{tpu_custom_call.1} parent=11 // pred_check_branch
          %115 = sbr.rel (%p113) target = $region16
        $region15: #{tpu_custom_call.1} parent=11 // pred_region
          %s117 = ssub.s32 32, 32
          %118 = vsyncadd [#allocation3], %s117
          %s120 = sshll.u32 %s0, 4
          %s121 = int_to_ptr.vmem [resolvable:$true] %s120
          %123 = dma.vmem_to_smem %s121, 32, [#allocation2], [#allocation3]
        $region16: #{tpu_custom_call.1} parent=11 // pred_fallthru
          _
      $region12: #{tpu_custom_call.1} parent=5 // pred_fallthru
        _
      %p124 = scmp.lt.s32.totalorder %s9, 2
      // Predicated region
      $region17: #{tpu_custom_call.1} parent=5 // pred_check
        %p125 = pneg %p124
      $region18: #{tpu_custom_call.1} parent=5 // pred_check_branch
        %127 = sbr.rel (%p125) target = $region20
      $region19: #{tpu_custom_call.1} parent=5 // pred_region
        // Predicated region
        $region21: #{tpu_custom_call.1} parent=19 // pred_check
          %p128 = pneg %p64
        $region22: #{tpu_custom_call.1} parent=19 // pred_check_branch
          %130 = sbr.rel (%p128) target = $region24
        $region23: #{tpu_custom_call.1} parent=19 // pred_region
          %p131 = scmp.lt.s32.totalorder %s16, 1
          %s132 = scalar_select %p131, %s16, 1
          %p133 = scmp.lt.s32.totalorder %s17, 0
          %s134 = scalar_select %p133, %s17, 0
          %s135 = sadd.s32 %s134, %s132
          %s136 = smul.addr %s135, 4
          %s137 = scalar_lea.vmem %s1, %s136
        $region24: #{tpu_custom_call.1} parent=19 // pred_fallthru
          _
      $region20: #{tpu_custom_call.1} parent=5 // pred_fallthru
        _
      %p138 = scmp.le.s32.totalorder 1, %s9
      %p139 = scmp.lt.s32.totalorder %s9, 3
      %p140 = pnand %p138, %p139
      %p141 = pneg %p140
      // Predicated region
      $region25: #{tpu_custom_call.1} parent=5 // pred_check
        _
      $region26: #{tpu_custom_call.1} parent=5 // pred_check_branch
        %143 = sbr.rel (%p140) target = $region28
      $region27: #{tpu_custom_call.1} parent=5 // pred_region
        %s144 = ssub.s32 %s9, 1
        // Predicated region
        $region29: #{tpu_custom_call.1} parent=27 // pred_check
          %p145 = pneg %p42
        $region30: #{tpu_custom_call.1} parent=27 // pred_check_branch
          %147 = sbr.rel (%p145) target = $region32
        $region31: #{tpu_custom_call.1} parent=27 // pred_region
          %148 = dma.done [#allocation3], 32
        $region32: #{tpu_custom_call.1} parent=27 // pred_fallthru
          _
        %149 = sfence
        %p150 = pneg %p42
        %p151 = pneg %p39
        %p152 = scmp.lt.s32.totalorder %s18, 1
        %s153 = scalar_select %p152, %s18, 1
        %p154 = scmp.lt.s32.totalorder %s19, 0
        %s155 = scalar_select %p154, %s19, 0
        %s156 = sadd.s32 %s155, %s153
        %s157 = smul.addr %s156, 4
        %s158 = scalar_lea.vmem %s1, %s157
        %p159 = pneg %p70
        %p160 = pneg %p67
        %p161 = pneg %p98
        %p162 = pneg %p95
        %p163 = scmp.lt.s32.totalorder %s18, 1
        %s164 = scalar_select %p163, %s18, 1
        %p165 = scmp.lt.s32.totalorder %s19, 0
        %s166 = scalar_select %p165, %s19, 0
        %s167 = sadd.s32 %s166, %s164
        %s168 = smul.addr %s167, 4
        %s169 = scalar_lea.vmem %s2, %s168
        %p170 = scmp.lt.s32.totalorder %s18, 1
        %s171 = scalar_select %p170, %s18, 1
        %p172 = scmp.lt.s32.totalorder %s19, 0
        %s173 = scalar_select %p172, %s19, 0
        %s174 = sadd.s32 %s173, %s171
        %s175 = smul.addr %s174, 4
        %s176 = scalar_lea.vmem %s1, %s175
        %p177 = scmp.lt.s32.totalorder %s18, 1
        %s178 = scalar_select %p177, %s18, 1
        %p179 = scmp.lt.s32.totalorder %s19, 0
        %s180 = scalar_select %p179, %s19, 0
        %s181 = sadd.s32 %s180, %s178
        %s182 = smul.addr %s181, 4
        %s183 = scalar_lea.vmem %s2, %s182
        %s184 = smul.u32 %s18, 128
        %s185 = sld [smem:[#allocation2 + %s184]]
        %s186 = sadd.s32 %s184, 1
        %s187 = sld [smem:[#allocation2 + %s186]]
        %s188 = sadd.s32 %s184, 2
        %s189 = sld [smem:[#allocation2 + %s188]]
        %s190 = sadd.s32 %s184, 3
        %s191 = sld [smem:[#allocation2 + %s190]]
        %s192 = sadd.s32 %s184, 4
        %s193 = sld [smem:[#allocation2 + %s192]]
        %s194 = sadd.s32 %s184, 5
        %s195 = sld [smem:[#allocation2 + %s194]]
        %s196 = sadd.s32 %s184, 6
        %s197 = sld [smem:[#allocation2 + %s196]]
        %s198 = sadd.s32 %s184, 7
        %s199 = sld [smem:[#allocation2 + %s198]]
        %s200 = sadd.s32 %s184, 8
        %s201 = sld [smem:[#allocation2 + %s200]]
        %s202 = sadd.s32 %s184, 9
        %s203 = sld [smem:[#allocation2 + %s202]]
        %s204 = sadd.s32 %s184, 10
        %s205 = sld [smem:[#allocation2 + %s204]]
        %s206 = sadd.s32 %s184, 11
        %s207 = sld [smem:[#allocation2 + %s206]]
        %s208 = sadd.s32 %s184, 12
        %s209 = sld [smem:[#allocation2 + %s208]]
        %s210 = sadd.s32 %s184, 13
        %s211 = sld [smem:[#allocation2 + %s210]]
        %s212 = sadd.s32 %s184, 14
        %s213 = sld [smem:[#allocation2 + %s212]]
        %s214 = sadd.s32 %s184, 15
        %s215 = sld [smem:[#allocation2 + %s214]]
        %s216 = sadd.s32 %s184, 16
        %s217 = sld [smem:[#allocation2 + %s216]]
        %s218 = sadd.s32 %s184, 17
        %s219 = sld [smem:[#allocation2 + %s218]]
        %s220 = sadd.s32 %s184, 18
        %s221 = sld [smem:[#allocation2 + %s220]]
        %s222 = sadd.s32 %s184, 19
        %s223 = sld [smem:[#allocation2 + %s222]]
        %s224 = sadd.s32 %s184, 20
        %s225 = sld [smem:[#allocation2 + %s224]]
        %s226 = sadd.s32 %s184, 21
        %s227 = sld [smem:[#allocation2 + %s226]]
        %v228 = vld [vmem:[%s176] sm:$0x7]
        %v229 = vstv %s185
        %v230 = vsub.f32 %v228, %v229
        %v231 = vstv %s187
        %v232 = vsub.f32 %v228, %v231
        %v233 = vstv %s189
        %v234 = vsub.f32 %v228, %v233
        %v235 = vstv %s191
        %v236 = vmul.f32 %v235, %v230
        %v237 = vstv %s193
        %v238 = vmul.f32 %v237, %v232
        %v240 = vrot.slane %v238, 1
        %v242 = vadd.f32 %v236, %v240
        %v243 = vstv %s195
        %v244 = vmul.f32 %v243, %v234
        %v246 = vrot.slane %v244, 2
        %v248 = vadd.f32 %v242, %v246
        %v249 = vstv %s197
        %v250 = vmul.f32 %v249, %v230
        %v251 = vstv %s199
        %v252 = vmul.f32 %v251, %v232
        %v254 = vrot.slane %v252, 1
        %v256 = vadd.f32 %v250, %v254
        %v257 = vstv %s201
        %v258 = vmul.f32 %v257, %v234
        %v260 = vrot.slane %v258, 2
        %v262 = vadd.f32 %v256, %v260
        %v263 = vstv %s203
        %v264 = vmul.f32 %v263, %v230
        %v265 = vstv %s205
        %v266 = vmul.f32 %v265, %v232
        %v268 = vrot.slane %v266, 1
        %v270 = vadd.f32 %v264, %v268
        %v271 = vstv %s207
        %v272 = vmul.f32 %v271, %v234
        %v274 = vrot.slane %v272, 2
        %v276 = vadd.f32 %v270, %v274
        %vm277 = vcmp.eq.f32.partialorder %v276, 0.0
        %v278 = vsel %vm277, 1, 0
        %v279 = vcvt.s32.f32 %v278
        %v280 = vmul.f32 %v279, 0.0001
        %v281 = vadd.f32 %v276, %v280
        %v282 = vrcp.pop %v281
        %v283 = vmul.f32 1.0, %v282
        %v284 = vmul.f32 %v248, %v283
        %v285 = vstv %s209
        %v286 = vmul.f32 %v284, %v285
        %v287 = vstv %s213
        %v288 = vadd.f32 %v286, %v287
        %v289 = vmul.f32 %v262, %v283
        %v290 = vstv %s211
        %v291 = vmul.f32 %v289, %v290
        %v292 = vstv %s215
        %v293 = vadd.f32 %v291, %v292
        %v294 = vstv %s217
        %v295 = vmul.f32 %v294, %v288
        %v296 = vstv %s219
        %v297 = vmul.f32 %v296, %v293
        %v298 = vadd.f32 %v295, %v297
        %v299 = vstv %s221
        %v300 = vadd.f32 %v298, %v299
        %v301 = vstv %s223
        %v302 = vmul.f32 %v301, %v288
        %v303 = vstv %s225
        %v304 = vmul.f32 %v303, %v293
        %v305 = vadd.f32 %v302, %v304
        %v306 = vstv %s227
        %v307 = vadd.f32 %v305, %v306
        %v308 = vrcp.pop 16.0
        %v309 = vmul.f32 %v300, %v308
        %v310 = vmul.f32 %v309, 2.0
        %v311 = vsub.f32 %v310, 1.0
        %v312 = vsub.f32 15.0, %v307
        %v313 = vmul.f32 %v312, %v308
        %v314 = vmul.f32 %v313, 2.0
        %v315 = vsub.f32 %v314, 1.0
        %v317 = vrot.slane %v315, 7
        %v320 = vrot.slane %v281, 6
        %vm322 = vcmask 1040384
        %v323 = vsel %vm322, %v311, %v317
        %vm324 = vcmask 1041408
        %v325 = vsel %vm324, %v323, %v320
        %326 = vst [vmem:[%s183] sm:$0x7] %v325
        %p327 = scmp.lt.s32.totalorder %s18, 1
        %s328 = scalar_select %p327, %s18, 1
        %p329 = scmp.lt.s32.totalorder %s19, 0
        %s330 = scalar_select %p329, %s19, 0
        %s331 = sadd.s32 %s330, %s328
        %s332 = smul.addr %s331, 4
        %s333 = scalar_lea.vmem %s2, %s332
        // Predicated region
        $region33: #{tpu_custom_call.1} parent=27 // pred_check
          %p334 = pneg %p95
        $region34: #{tpu_custom_call.1} parent=27 // pred_check_branch
          %336 = sbr.rel (%p334) target = $region36
        $region35: #{tpu_custom_call.1} parent=27 // pred_region
          _
        $region36: #{tpu_custom_call.1} parent=27 // pred_fallthru
          _
      $region28: #{tpu_custom_call.1} parent=5 // pred_fallthru
        _
      %p337 = scmp.le.s32.totalorder 2, %s9
      // Predicated region
      $region37: #{tpu_custom_call.1} parent=5 // pred_check
        %p338 = pneg %p337
      $region38: #{tpu_custom_call.1} parent=5 // pred_check_branch
        %340 = sbr.rel (%p338) target = $region40
      $region39: #{tpu_custom_call.1} parent=5 // pred_region
        %s341 = ssub.s32 %s9, 2
        // Predicated region
        $region41: #{tpu_custom_call.1} parent=39 // pred_check
          %p342 = pneg %p101
        $region42: #{tpu_custom_call.1} parent=39 // pred_check_branch
          %344 = sbr.rel (%p342) target = $region44
        $region43: #{tpu_custom_call.1} parent=39 // pred_region
          %p345 = scmp.lt.s32.totalorder %s20, 1
          %s346 = scalar_select %p345, %s20, 1
          %p347 = scmp.lt.s32.totalorder %s21, 0
          %s348 = scalar_select %p347, %s21, 0
          %s349 = sadd.s32 %s348, %s346
          %s350 = smul.addr %s349, 4
          %s351 = scalar_lea.vmem %s2, %s350
        $region44: #{tpu_custom_call.1} parent=39 // pred_fallthru
          _
      $region40: #{tpu_custom_call.1} parent=5 // pred_fallthru
        _
    $region6: #{tpu_custom_call.1} parent=1 // loop_footer
      %s13 = sadd.s32 1, %s9
    $region7: #{tpu_custom_call.1} parent=1 // loop_footer_branch
      %8 = sbr.rel target = $region3
    $region8: #{tpu_custom_call.1} parent=1 // loop_exit
      _
    %352 = vsyncpa [#allocation3], 1
    %s353 = scalar_lea.sflag [#allocation3], 1
    %354 = vsyncpa %s353, 1

</llo_original>
